<compile_context>
chip_gen: v6e
topology: v6e:2x2x1
jax: 0.10.0
libtpu: 0.0.40
codegen_flags: <defaults>
</compile_context>

<pallas_src>
import jax
import jax.numpy as jnp
import numpy as np
from jax.experimental import pallas as pl
from jax.experimental.pallas import tpu as pltpu


def _se_block_kernel(x_ref, w1_ref, b1_ref, w2_ref, b2_ref, o_ref):
    # x_ref, o_ref: (BN, C, HW)   activations, H*W flattened onto the lane axis
    # w1_ref: (Cr, C)   squeeze 1x1-conv weight (torch layout, k-dims squeezed)
    # b1_ref: (Cr, 1)
    # w2_ref: (C, Cr)   excite 1x1-conv weight
    # b2_ref: (C, 1)
    bn, _, hw = x_ref.shape
    inv_hw = 1.0 / hw

    # Static (small) unrolled loop over the samples in this batch block; all
    # per-sample tensors are 2-D with C on sublanes and spatial on lanes, so no
    # lane<->sublane relayouts are needed anywhere.
    for b in range(bn):
        x = x_ref[b].astype(jnp.float32)                         # (C, HW)

        # ---- squeeze: global average pool over H*W (lane reduction)
        pooled = jnp.sum(x, axis=-1, keepdims=True) * inv_hw     # (C, 1)

        # ---- excitation MLP: two tiny MXU matmuls (column-vector form)
        h = jnp.dot(w1_ref[...], pooled,
                    preferred_element_type=jnp.float32) + b1_ref[...]   # (Cr, 1)
        h = jnp.maximum(h, 0.0)
        z = jnp.dot(w2_ref[...], h,
                    preferred_element_type=jnp.float32) + b2_ref[...]   # (C, 1)
        scale = 1.0 / (1.0 + jnp.exp(-z))                        # sigmoid, (C, 1)

        # ---- excite: per-channel gate, broadcast over the spatial (lane) axis
        o_ref[b] = (x * scale).astype(o_ref.dtype)


def _pick_block_n(n, c, hw, requested=None, vmem_budget_bytes=8 * 1024 * 1024):
    """Largest batch block whose double-buffered in+out tiles fit the VMEM budget."""
    bytes_per_sample = c * hw * 4                       # f32
    bn = max(1, min(n, vmem_budget_bytes // max(1, 4 * bytes_per_sample)))
    if requested is not None:
        bn = max(1, min(bn, requested))
    while n % bn:                                       # keep the grid exact
        bn -= 1
    return bn


def se_block_nchw(x, w1, b1, w2, b2, *, block_n=None):
    """SEBlock forward pass.

    x : (N, C, H, W)              input, PyTorch NCHW layout
    w1: (Cr, C, 1, 1), b1: (Cr,)  first 1x1 conv (squeeze, Cr = C // reduction)
    w2: (C, Cr, 1, 1), b2: (C,)   second 1x1 conv (excite)
    """
    N, C, H, W = x.shape
    Cr = w1.shape[0]
    HW = H * W

    x_flat = x.reshape(N, C, HW)        # free reshape: merges the two minor dims
    w1m = w1.reshape(Cr, C)
    w2m = w2.reshape(C, Cr)
    b1c = b1.reshape(Cr, 1)
    b2c = b2.reshape(C, 1)

    BN = _pick_block_n(N, C, HW, block_n)
    grid = (N // BN,)
    # TODO(synk): if H*W ever grows too large for a (BN, C, HW) block in VMEM,
    # add a spatial grid axis with a pool-accumulate pass followed by a scale pass.

    out_flat = pl.pallas_call(
        _se_block_kernel,
        out_shape=jax.ShapeDtypeStruct((N, C, HW), x.dtype),
        grid_spec=pltpu.PrefetchScalarGridSpec(
            num_scalar_prefetch=0,
            grid=grid,
            in_specs=[
                pl.BlockSpec((BN, C, HW), lambda n: (n, 0, 0)),
                pl.BlockSpec((Cr, C), lambda n: (0, 0)),
                pl.BlockSpec((Cr, 1), lambda n: (0, 0)),
                pl.BlockSpec((C, Cr), lambda n: (0, 0)),
                pl.BlockSpec((C, 1), lambda n: (0, 0)),
            ],
            out_specs=pl.BlockSpec((BN, C, HW), lambda n: (n, 0, 0)),
        ),
        compiler_params=pltpu.CompilerParams(
            dimension_semantics=("parallel",),
        ),
    )(x_flat, w1m, b1c, w2m, b2c)
    return out_flat.reshape(N, C, H, W)


def _ref_se_block(x, w1, b1, w2, b2):
    """Plain-JAX reference of the PyTorch SEBlock forward."""
    Cr, C = w1.shape[0], w1.shape[1]
    pooled = jnp.mean(x, axis=(2, 3))                                   # (N, C)
    h = jnp.maximum(pooled @ w1.reshape(Cr, C).T + b1, 0.0)             # (N, Cr)
    z = h @ w2.reshape(C, Cr).T + b2                                    # (N, C)
    scale = 1.0 / (1.0 + jnp.exp(-z))                                   # sigmoid
    return x * scale[:, :, None, None]


if __name__ == "__main__":
    N, C, H, W = 4, 64, 16, 16
    reduction = 16
    Cr = C // reduction

    key = jax.random.PRNGKey(0)
    kx, kw1, kb1, kw2, kb2 = jax.random.split(key, 5)

    # Deterministic synthetic parameters, same shapes/init scale as
    # nn.Conv2d(C, C//r, 1) / nn.Conv2d(C//r, C, 1).
    bound1 = 1.0 / np.sqrt(C * 1 * 1)
    w1 = jax.random.uniform(kw1, (Cr, C, 1, 1), jnp.float32, -bound1, bound1)
    b1 = jax.random.uniform(kb1, (Cr,), jnp.float32, -bound1, bound1)
    bound2 = 1.0 / np.sqrt(Cr * 1 * 1)
    w2 = jax.random.uniform(kw2, (C, Cr, 1, 1), jnp.float32, -bound2, bound2)
    b2 = jax.random.uniform(kb2, (C,), jnp.float32, -bound2, bound2)

    x = jax.random.normal(kx, (N, C, H, W), jnp.float32)

    out = se_block_nchw(x, w1, b1, w2, b2, block_n=2)
    out = jax.block_until_ready(out)

    ref = _ref_se_block(x, w1, b1, w2, b2)
    np.testing.assert_allclose(np.asarray(out), np.asarray(ref), rtol=1e-5, atol=1e-5)

    print("KERNEL_OK")
</pallas_src>

<mosaic_0001>
module attributes {stable_mosaic.version = 11 : i64} {
  func.func @_se_block_kernel(%arg0: i32, %arg1: memref<2x64x256xf32, #tpu.memory_space<vmem>>, %arg2: memref<4x64xf32, #tpu.memory_space<vmem>>, %arg3: memref<4x1xf32, #tpu.memory_space<vmem>>, %arg4: memref<64x4xf32, #tpu.memory_space<vmem>>, %arg5: memref<64x1xf32, #tpu.memory_space<vmem>>, %arg6: memref<2x64x256xf32, #tpu.memory_space<vmem>>) attributes {dimension_semantics = [#tpu.dimension_semantics<parallel>], iteration_bounds = array<i64: 2>, scalar_prefetch = 0 : i64, scratch_operands = 0 : i64, tpu.core_type = #tpu.core_type<tc>, window_params = [{transform_indices = @transform_0, window_bounds = array<i64: 2, 64, 256>}, {pipeline_mode = #tpu.pipeline_mode<synchronous>, transform_indices = @transform_1, window_bounds = array<i64: 4, 64>}, {pipeline_mode = #tpu.pipeline_mode<synchronous>, transform_indices = @transform_2, window_bounds = array<i64: 4, 1>}, {pipeline_mode = #tpu.pipeline_mode<synchronous>, transform_indices = @transform_3, window_bounds = array<i64: 64, 4>}, {pipeline_mode = #tpu.pipeline_mode<synchronous>, transform_indices = @transform_4, window_bounds = array<i64: 64, 1>}, {transform_indices = @transform_5, window_bounds = array<i64: 2, 64, 256>}]} {
    %c0 = arith.constant 0 : index
    %c0_0 = arith.constant 0 : index
    %c0_1 = arith.constant 0 : index
    %0 = vector.load %arg1[%c0, %c0_0, %c0_1] : memref<2x64x256xf32, #tpu.memory_space<vmem>>, vector<1x64x256xf32>
    %1 = vector.shape_cast %0 : vector<1x64x256xf32> to vector<64x256xf32>
    %cst = arith.constant dense<0.000000e+00> : vector<64xf32>
    %2 = vector.multi_reduction <add>, %1, %cst [1] : vector<64x256xf32> to vector<64xf32>
    %3 = vector.shape_cast %2 : vector<64xf32> to vector<64x1xf32>
    %cst_2 = arith.constant 3.906250e-03 : f32
    %4 = vector.broadcast %cst_2 : f32 to vector<64x1xf32>
    %5 = arith.mulf %3, %4 : vector<64x1xf32>
    %c0_3 = arith.constant 0 : index
    %c0_4 = arith.constant 0 : index
    %6 = vector.load %arg2[%c0_3, %c0_4] : memref<4x64xf32, #tpu.memory_space<vmem>>, vector<4x64xf32>
    %cst_5 = arith.constant dense<0.000000e+00> : vector<4x1xf32>
    %7 = tpu.matmul %6, %5, %cst_5 {dimension_numbers = #tpu.dot_dimension_numbers<[1], [0], [0], [1], [0, 0, 1, 1], [], []>} : vector<4x64xf32>, vector<64x1xf32>, vector<4x1xf32> -> vector<4x1xf32>
    %c0_6 = arith.constant 0 : index
    %c0_7 = arith.constant 0 : index
    %8 = vector.load %arg3[%c0_6, %c0_7] : memref<4x1xf32, #tpu.memory_space<vmem>>, vector<4x1xf32>
    %9 = arith.addf %7, %8 : vector<4x1xf32>
    %cst_8 = arith.constant 0.000000e+00 : f32
    %10 = vector.broadcast %cst_8 : f32 to vector<4x1xf32>
    %11 = arith.maximumf %9, %10 : vector<4x1xf32>
    %c0_9 = arith.constant 0 : index
    %c0_10 = arith.constant 0 : index
    %12 = vector.load %arg4[%c0_9, %c0_10] : memref<64x4xf32, #tpu.memory_space<vmem>>, vector<64x4xf32>
    %cst_11 = arith.constant dense<0.000000e+00> : vector<64x1xf32>
    %13 = tpu.matmul %12, %11, %cst_11 {dimension_numbers = #tpu.dot_dimension_numbers<[1], [0], [0], [1], [0, 0, 1, 1], [], []>} : vector<64x4xf32>, vector<4x1xf32>, vector<64x1xf32> -> vector<64x1xf32>
    %c0_12 = arith.constant 0 : index
    %c0_13 = arith.constant 0 : index
    %14 = vector.load %arg5[%c0_12, %c0_13] : memref<64x1xf32, #tpu.memory_space<vmem>>, vector<64x1xf32>
    %15 = arith.addf %13, %14 : vector<64x1xf32>
    %cst_14 = arith.constant 0.000000e+00 : f32
    %16 = vector.broadcast %cst_14 : f32 to vector<64x1xf32>
    %17 = arith.subf %16, %15 : vector<64x1xf32>
    %18 = math.exp %17 : vector<64x1xf32>
    %cst_15 = arith.constant 1.000000e+00 : f32
    %19 = vector.broadcast %cst_15 : f32 to vector<64x1xf32>
    %20 = arith.addf %19, %18 : vector<64x1xf32>
    %cst_16 = arith.constant 1.000000e+00 : f32
    %21 = vector.broadcast %cst_16 : f32 to vector<64x1xf32>
    %22 = arith.divf %21, %20 : vector<64x1xf32>
    %23 = vector.broadcast %22 : vector<64x1xf32> to vector<64x256xf32>
    %24 = arith.mulf %1, %23 : vector<64x256xf32>
    %c0_17 = arith.constant 0 : index
    %c0_18 = arith.constant 0 : index
    %c0_19 = arith.constant 0 : index
    %25 = vector.load %arg6[%c0_17, %c0_18, %c0_19] : memref<2x64x256xf32, #tpu.memory_space<vmem>>, vector<1x64x256xf32>
    %26 = vector.shape_cast %25 : vector<1x64x256xf32> to vector<64x256xf32>
    %27 = vector.shape_cast %24 : vector<64x256xf32> to vector<1x64x256xf32>
    tpu.vector_store %arg6[%c0_17, %c0_18, %c0_19], %27 {strides = array<i32>} : memref<2x64x256xf32, #tpu.memory_space<vmem>>, vector<1x64x256xf32>,
    %c1 = arith.constant 1 : index
    %c0_20 = arith.constant 0 : index
    %c0_21 = arith.constant 0 : index
    %28 = vector.load %arg1[%c1, %c0_20, %c0_21] : memref<2x64x256xf32, #tpu.memory_space<vmem>>, vector<1x64x256xf32>
    %29 = vector.shape_cast %28 : vector<1x64x256xf32> to vector<64x256xf32>
    %cst_22 = arith.constant dense<0.000000e+00> : vector<64xf32>
    %30 = vector.multi_reduction <add>, %29, %cst_22 [1] : vector<64x256xf32> to vector<64xf32>
    %31 = vector.shape_cast %30 : vector<64xf32> to vector<64x1xf32>
    %cst_23 = arith.constant 3.906250e-03 : f32
    %32 = vector.broadcast %cst_23 : f32 to vector<64x1xf32>
    %33 = arith.mulf %31, %32 : vector<64x1xf32>
    %c0_24 = arith.constant 0 : index
    %c0_25 = arith.constant 0 : index
    %34 = vector.load %arg2[%c0_24, %c0_25] : memref<4x64xf32, #tpu.memory_space<vmem>>, vector<4x64xf32>
    %cst_26 = arith.constant dense<0.000000e+00> : vector<4x1xf32>
    %35 = tpu.matmul %34, %33, %cst_26 {dimension_numbers = #tpu.dot_dimension_numbers<[1], [0], [0], [1], [0, 0, 1, 1], [], []>} : vector<4x64xf32>, vector<64x1xf32>, vector<4x1xf32> -> vector<4x1xf32>
    %c0_27 = arith.constant 0 : index
    %c0_28 = arith.constant 0 : index
    %36 = vector.load %arg3[%c0_27, %c0_28] : memref<4x1xf32, #tpu.memory_space<vmem>>, vector<4x1xf32>
    %37 = arith.addf %35, %36 : vector<4x1xf32>
    %cst_29 = arith.constant 0.000000e+00 : f32
    %38 = vector.broadcast %cst_29 : f32 to vector<4x1xf32>
    %39 = arith.maximumf %37, %38 : vector<4x1xf32>
    %c0_30 = arith.constant 0 : index
    %c0_31 = arith.constant 0 : index
    %40 = vector.load %arg4[%c0_30, %c0_31] : memref<64x4xf32, #tpu.memory_space<vmem>>, vector<64x4xf32>
    %cst_32 = arith.constant dense<0.000000e+00> : vector<64x1xf32>
    %41 = tpu.matmul %40, %39, %cst_32 {dimension_numbers = #tpu.dot_dimension_numbers<[1], [0], [0], [1], [0, 0, 1, 1], [], []>} : vector<64x4xf32>, vector<4x1xf32>, vector<64x1xf32> -> vector<64x1xf32>
    %c0_33 = arith.constant 0 : index
    %c0_34 = arith.constant 0 : index
    %42 = vector.load %arg5[%c0_33, %c0_34] : memref<64x1xf32, #tpu.memory_space<vmem>>, vector<64x1xf32>
    %43 = arith.addf %41, %42 : vector<64x1xf32>
    %cst_35 = arith.constant 0.000000e+00 : f32
    %44 = vector.broadcast %cst_35 : f32 to vector<64x1xf32>
    %45 = arith.subf %44, %43 : vector<64x1xf32>
    %46 = math.exp %45 : vector<64x1xf32>
    %cst_36 = arith.constant 1.000000e+00 : f32
    %47 = vector.broadcast %cst_36 : f32 to vector<64x1xf32>
    %48 = arith.addf %47, %46 : vector<64x1xf32>
    %cst_37 = arith.constant 1.000000e+00 : f32
    %49 = vector.broadcast %cst_37 : f32 to vector<64x1xf32>
    %50 = arith.divf %49, %48 : vector<64x1xf32>
    %51 = vector.broadcast %50 : vector<64x1xf32> to vector<64x256xf32>
    %52 = arith.mulf %29, %51 : vector<64x256xf32>
    %c1_38 = arith.constant 1 : index
    %c0_39 = arith.constant 0 : index
    %c0_40 = arith.constant 0 : index
    %53 = vector.load %arg6[%c1_38, %c0_39, %c0_40] : memref<2x64x256xf32, #tpu.memory_space<vmem>>, vector<1x64x256xf32>
    %54 = vector.shape_cast %53 : vector<1x64x256xf32> to vector<64x256xf32>
    %55 = vector.shape_cast %52 : vector<64x256xf32> to vector<1x64x256xf32>
    tpu.vector_store %arg6[%c1_38, %c0_39, %c0_40], %55 {strides = array<i32>} : memref<2x64x256xf32, #tpu.memory_space<vmem>>, vector<1x64x256xf32>,
    return
  }
  func.func @transform_0(%arg0: i32) -> (i32, i32, i32) {
    %c0_i32 = arith.constant 0 : i32
    %c0_i32_0 = arith.constant 0 : i32
    %c0_i32_1 = arith.constant 0 : i32
    return %arg0, %c0_i32, %c0_i32_0 : i32, i32, i32
  }
  func.func @transform_1(%arg0: i32) -> (i32, i32) {
    %c0_i32 = arith.constant 0 : i32
    %c0_i32_0 = arith.constant 0 : i32
    %c0_i32_1 = arith.constant 0 : i32
    return %c0_i32, %c0_i32_0 : i32, i32
  }
  func.func @transform_2(%arg0: i32) -> (i32, i32) {
    %c0_i32 = arith.constant 0 : i32
    %c0_i32_0 = arith.constant 0 : i32
    %c0_i32_1 = arith.constant 0 : i32
    return %c0_i32, %c0_i32_0 : i32, i32
  }
  func.func @transform_3(%arg0: i32) -> (i32, i32) {
    %c0_i32 = arith.constant 0 : i32
    %c0_i32_0 = arith.constant 0 : i32
    %c0_i32_1 = arith.constant 0 : i32
    return %c0_i32, %c0_i32_0 : i32, i32
  }
  func.func @transform_4(%arg0: i32) -> (i32, i32) {
    %c0_i32 = arith.constant 0 : i32
    %c0_i32_0 = arith.constant 0 : i32
    %c0_i32_1 = arith.constant 0 : i32
    return %c0_i32, %c0_i32_0 : i32, i32
  }
  func.func @transform_5(%arg0: i32) -> (i32, i32, i32) {
    %c0_i32 = arith.constant 0 : i32
    %c0_i32_0 = arith.constant 0 : i32
    %c0_i32_1 = arith.constant 0 : i32
    return %arg0, %c0_i32, %c0_i32_0 : i32, i32, i32
  }
}

</mosaic_0001>

<llo_original>
// kernel: tpu_custom_call.1
$region0: #{tpu_custom_call.1}
  #allocation0 [shape = 'u32[]', space=smem, size = 0x4, offset = 0x4, fixed_abs, tag = 'smem constant byte address 0x4 - core index']
  #allocation1 [shape = 'u32[144,128]{1,0:T(1,128)}', space=vmem, size = 0x12000, scoped, tag = 'internal scratch']
  %s0 = inlined_call_operand.hbm [shape: f32[4,64,256], index: 0, kind: input, shape index: {}]
  %s1 = inlined_call_operand.vmem [shape: f32[4,64], index: 1, kind: input, shape index: {}]
  %s2 = inlined_call_operand.vmem [shape: f32[4,1], index: 2, kind: input, shape index: {}]
  %s3 = inlined_call_operand.vmem [shape: f32[64,4], index: 3, kind: input, shape index: {}]
  %s4 = inlined_call_operand.vmem [shape: f32[64,1], index: 4, kind: input, shape index: {}]
  %s5 = inlined_call_operand.hbm [shape: f32[4,64,256], index: 5, kind: output, shape index: {}]
  %s6 = sld [smem:[#allocation0]]
  $region57: #{tpu_custom_call.1} parent=0
    _
  %s8 = ssub.s32 1, %s6
  %s9 = scalar_select 0, %s8, %s6
  $region1: #{tpu_custom_call.1} parent=0
    #allocation2 [shape = 'u8[262144]{0}', space=vmem, size = 0x40000, scoped, tag = 'input window, operand 0']
    #allocation3 [shape = 's32[2]{0}', space=sflag, size = 0x8, scoped, tag = 'scoped memory for tpu_custom_call.1']
    #allocation4 [shape = 's32[2]{0}', space=sflag, size = 0x8, scoped, tag = 'scoped memory for tpu_custom_call.1']
    #allocation5 [shape = 'u8[262144]{0}', space=vmem, size = 0x40000, scoped, tag = 'output window, operand 0']
    %10 = vsyncpa [#allocation3], 0
    %s11 = scalar_lea.sflag [#allocation3], 1
    %12 = vsyncpa %s11, 0
    %13 = vsyncpa [#allocation4], 0
    %s14 = scalar_lea.sflag [#allocation4], 1
    %15 = vsyncpa %s14, 0
    loop: start=0, step=1, limit=4
    $region2: #{tpu_custom_call.1} parent=1 // loop_pre_header
      _
    $region3: #{tpu_custom_call.1} parent=1 // loop_header
      %s17 = sphi 0, %s21
      %p18 = scmp.ge.s32.totalorder %s17, 4
      %s27 = sphi 0, %s29
      %s30 = sphi 0, %s27
      %s31 = sphi 0, %s30
      %s47 = sphi 0, %s31
      %s51 = sphi 0, %s51
      %s53 = sphi 0, %s51
      %s54 = sphi 0, %s53
      %s68 = sphi 0, %s54
      %s72 = sphi 0, %s72
      %s74 = sphi 0, %s72
      %s75 = sphi 0, %s74
      %s89 = sphi 0, %s75
      %s93 = sphi 0, %s93
      %s95 = sphi 0, %s93
      %s96 = sphi 0, %s95
      %s110 = sphi 0, %s96
      %s114 = sphi 0, %s114
      %s116 = sphi 0, %s114
      %s117 = sphi 0, %s116
      %s131 = sphi 0, %s117
      %s137 = sphi 0, %s139
      %s140 = sphi 0, %s137
      %s141 = sphi 0, %s140
      %s157 = sphi 0, %s141
    $region4: #{tpu_custom_call.1} parent=1 // loop_header_branch
      %20 = sbr.rel (%p18) target = $region8
    $region5: #{tpu_custom_call.1} parent=1 // loop_body
      %s22 = ssub.s32 %s17, 1
      %s23 = ssub.s32 %s17, 2
      %s24 = sadd.s32 %s17, 1
      %s25 = ssub.s32 %s17, %s24
      %p26 = scmp.eq.s32.totalorder %s25, 0
      %s28 = sadd.s32 %s27, 1
      %s29 = scalar_select %p26, %s27, %s28
      %p32 = pneg %p26
      %p33 = scmp.eq.s32.totalorder %s17, 1
      %p34 = por %p32, %p33
      %p35 = scmp.ne.s32.totalorder %s27, %s30
      %p36 = scmp.eq.s32.totalorder %s17, 0
      %p37 = por %p35, %p36
      %p38 = scmp.ne.s32.totalorder %s27, %s30
      %p39 = scmp.eq.s32.totalorder %s22, 1
      %p40 = por %p38, %p39
      %p41 = scmp.ne.s32.totalorder %s30, %s31
      %p42 = scmp.eq.s32.totalorder %s22, 0
      %p43 = por %p41, %p42
      %p44 = scmp.ne.s32.totalorder %s30, %s31
      %p45 = scmp.eq.s32.totalorder %s23, 1
      %p46 = por %p44, %p45
      %p48 = scmp.ne.s32.totalorder %s31, %s47
      %p49 = scmp.eq.s32.totalorder %s23, 0
      %p50 = por %p48, %p49
      %s52 = sadd.s32 %s51, 1
      %p55 = scmp.eq.s32.totalorder %s17, 1
      %p56 = scmp.ne.s32.totalorder %s51, %s53
      %p57 = scmp.eq.s32.totalorder %s17, 0
      %p58 = por %p56, %p57
      %p59 = scmp.ne.s32.totalorder %s51, %s53
      %p60 = scmp.eq.s32.totalorder %s22, 1
      %p61 = por %p59, %p60
      %p62 = scmp.ne.s32.totalorder %s53, %s54
      %p63 = scmp.eq.s32.totalorder %s22, 0
      %p64 = por %p62, %p63
      %p65 = scmp.ne.s32.totalorder %s53, %s54
      %p66 = scmp.eq.s32.totalorder %s23, 1
      %p67 = por %p65, %p66
      %p69 = scmp.ne.s32.totalorder %s54, %s68
      %p70 = scmp.eq.s32.totalorder %s23, 0
      %p71 = por %p69, %p70
      %s73 = sadd.s32 %s72, 1
      %p76 = scmp.eq.s32.totalorder %s17, 1
      %p77 = scmp.ne.s32.totalorder %s72, %s74
      %p78 = scmp.eq.s32.totalorder %s17, 0
      %p79 = por %p77, %p78
      %p80 = scmp.ne.s32.totalorder %s72, %s74
      %p81 = scmp.eq.s32.totalorder %s22, 1
      %p82 = por %p80, %p81
      %p83 = scmp.ne.s32.totalorder %s74, %s75
      %p84 = scmp.eq.s32.totalorder %s22, 0
      %p85 = por %p83, %p84
      %p86 = scmp.ne.s32.totalorder %s74, %s75
      %p87 = scmp.eq.s32.totalorder %s23, 1
      %p88 = por %p86, %p87
      %p90 = scmp.ne.s32.totalorder %s75, %s89
      %p91 = scmp.eq.s32.totalorder %s23, 0
      %p92 = por %p90, %p91
      %s94 = sadd.s32 %s93, 1
      %p97 = scmp.eq.s32.totalorder %s17, 1
      %p98 = scmp.ne.s32.totalorder %s93, %s95
      %p99 = scmp.eq.s32.totalorder %s17, 0
      %p100 = por %p98, %p99
      %p101 = scmp.ne.s32.totalorder %s93, %s95
      %p102 = scmp.eq.s32.totalorder %s22, 1
      %p103 = por %p101, %p102
      %p104 = scmp.ne.s32.totalorder %s95, %s96
      %p105 = scmp.eq.s32.totalorder %s22, 0
      %p106 = por %p104, %p105
      %p107 = scmp.ne.s32.totalorder %s95, %s96
      %p108 = scmp.eq.s32.totalorder %s23, 1
      %p109 = por %p107, %p108
      %p111 = scmp.ne.s32.totalorder %s96, %s110
      %p112 = scmp.eq.s32.totalorder %s23, 0
      %p113 = por %p111, %p112
      %s115 = sadd.s32 %s114, 1
      %p118 = scmp.eq.s32.totalorder %s17, 1
      %p119 = scmp.ne.s32.totalorder %s114, %s116
      %p120 = scmp.eq.s32.totalorder %s17, 0
      %p121 = por %p119, %p120
      %p122 = scmp.ne.s32.totalorder %s114, %s116
      %p123 = scmp.eq.s32.totalorder %s22, 1
      %p124 = por %p122, %p123
      %p125 = scmp.ne.s32.totalorder %s116, %s117
      %p126 = scmp.eq.s32.totalorder %s22, 0
      %p127 = por %p125, %p126
      %p128 = scmp.ne.s32.totalorder %s116, %s117
      %p129 = scmp.eq.s32.totalorder %s23, 1
      %p130 = por %p128, %p129
      %p132 = scmp.ne.s32.totalorder %s117, %s131
      %p133 = scmp.eq.s32.totalorder %s23, 0
      %p134 = por %p132, %p133
      %s135 = ssub.s32 %s17, %s24
      %p136 = scmp.eq.s32.totalorder %s135, 0
      %s138 = sadd.s32 %s137, 1
      %s139 = scalar_select %p136, %s137, %s138
      %p142 = pneg %p136
      %p143 = scmp.eq.s32.totalorder %s17, 1
      %p144 = por %p142, %p143
      %p145 = scmp.ne.s32.totalorder %s137, %s140
      %p146 = scmp.eq.s32.totalorder %s17, 0
      %p147 = por %p145, %p146
      %p148 = scmp.ne.s32.totalorder %s137, %s140
      %p149 = scmp.eq.s32.totalorder %s22, 1
      %p150 = por %p148, %p149
      %p151 = scmp.ne.s32.totalorder %s140, %s141
      %p152 = scmp.eq.s32.totalorder %s22, 0
      %p153 = por %p151, %p152
      %p154 = scmp.ne.s32.totalorder %s140, %s141
      %p155 = scmp.eq.s32.totalorder %s23, 1
      %p156 = por %p154, %p155
      %p158 = scmp.ne.s32.totalorder %s141, %s157
      %p159 = scmp.eq.s32.totalorder %s23, 0
      %p160 = por %p158, %p159
      %p161 = scmp.le.s32.totalorder 1, %s17
      %p162 = scmp.lt.s32.totalorder %s17, 3
      %p163 = pnand %p161, %p162
      %p164 = pneg %p163
      // Predicated region
      $region9: #{tpu_custom_call.1} parent=5 // pred_check
        _
      $region10: #{tpu_custom_call.1} parent=5 // pred_check_branch
        %166 = sbr.rel (%p163) target = $region12
      $region11: #{tpu_custom_call.1} parent=5 // pred_region
        %s167 = ssub.s32 %s17, 1
        // Predicated region
        $region13: #{tpu_custom_call.1} parent=11 // pred_check
          %p168 = pneg %p64
        $region14: #{tpu_custom_call.1} parent=11 // pred_check_branch
          %170 = sbr.rel (%p168) target = $region16
        $region15: #{tpu_custom_call.1} parent=11 // pred_region
          _
        $region16: #{tpu_custom_call.1} parent=11 // pred_fallthru
          _
        // Predicated region
        $region17: #{tpu_custom_call.1} parent=11 // pred_check
          %p171 = pneg %p85
        $region18: #{tpu_custom_call.1} parent=11 // pred_check_branch
          %173 = sbr.rel (%p171) target = $region20
        $region19: #{tpu_custom_call.1} parent=11 // pred_region
          _
        $region20: #{tpu_custom_call.1} parent=11 // pred_fallthru
          _
        // Predicated region
        $region21: #{tpu_custom_call.1} parent=11 // pred_check
          %p174 = pneg %p106
        $region22: #{tpu_custom_call.1} parent=11 // pred_check_branch
          %176 = sbr.rel (%p174) target = $region24
        $region23: #{tpu_custom_call.1} parent=11 // pred_region
          _
        $region24: #{tpu_custom_call.1} parent=11 // pred_fallthru
          _
        // Predicated region
        $region25: #{tpu_custom_call.1} parent=11 // pred_check
          %p177 = pneg %p127
        $region26: #{tpu_custom_call.1} parent=11 // pred_check_branch
          %179 = sbr.rel (%p177) target = $region28
        $region27: #{tpu_custom_call.1} parent=11 // pred_region
          _
        $region28: #{tpu_custom_call.1} parent=11 // pred_fallthru
          _
      $region12: #{tpu_custom_call.1} parent=5 // pred_fallthru
        _
      %p180 = scmp.lt.s32.totalorder %s17, 2
      // Predicated region
      $region29: #{tpu_custom_call.1} parent=5 // pred_check
        %p181 = pneg %p180
      $region30: #{tpu_custom_call.1} parent=5 // pred_check_branch
        %183 = sbr.rel (%p181) target = $region32
      $region31: #{tpu_custom_call.1} parent=5 // pred_region
        // Predicated region
        $region33: #{tpu_custom_call.1} parent=31 // pred_check
          %p184 = pneg %p37
        $region34: #{tpu_custom_call.1} parent=31 // pred_check_branch
          %186 = sbr.rel (%p184) target = $region36
        $region35: #{tpu_custom_call.1} parent=31 // pred_region
          %s187 = sand.u32 %s27, 1
          %s188 = scalar_lea.sflag [#allocation3], %s187
          %s189 = sand.u32 %s27, 1
          %s190 = smul.addr %s189, 256
          %s191 = scalar_lea.vmem [#allocation2], %s190
          %s192 = smul.u32 2, %s17
          %s194 = ssub.s32 4096, 4096
          %195 = vsyncadd %s188, %s194
          %s196 = smul.addr %s192, 16
          %s197 = smul.addr %s196, 128
          %s198 = scalar_lea.hbm %s0, %s197
          %s199 = sshll.u32 %s191, 4
          %s200 = int_to_ptr.vmem [resolvable:$true] %s199
          %205 = dma.hbm_to_vmem [thread:$0]  %s198, 4096, %s200, %s188, 256, 256, 16
        $region36: #{tpu_custom_call.1} parent=31 // pred_fallthru
          _
      $region32: #{tpu_custom_call.1} parent=5 // pred_fallthru
        _
      %p206 = scmp.le.s32.totalorder 1, %s17
      %p207 = scmp.lt.s32.totalorder %s17, 3
      %p208 = pnand %p206, %p207
      %p209 = pneg %p208
      // Predicated region
      $region37: #{tpu_custom_call.1} parent=5 // pred_check
        _
      $region38: #{tpu_custom_call.1} parent=5 // pred_check_branch
        %211 = sbr.rel (%p208) target = $region40
      $region39: #{tpu_custom_call.1} parent=5 // pred_region
        %s212 = ssub.s32 %s17, 1
        %s213 = sand.u32 %s30, 1
        %s214 = scalar_lea.sflag [#allocation3], %s213
        %s215 = sand.u32 %s30, 1
        %s216 = smul.addr %s215, 256
        %s217 = scalar_lea.vmem [#allocation2], %s216
        // Predicated region
        $region41: #{tpu_custom_call.1} parent=39 // pred_check
          %p218 = pneg %p43
        $region42: #{tpu_custom_call.1} parent=39 // pred_check_branch
          %220 = sbr.rel (%p218) target = $region44
        $region43: #{tpu_custom_call.1} parent=39 // pred_region
          %221 = dma.done %s214, 4096
        $region44: #{tpu_custom_call.1} parent=39 // pred_fallthru
          _
        %s222 = sand.u32 %s30, 1
        %s223 = scalar_lea.sflag [#allocation3], %s222
        %s224 = sand.u32 %s30, 1
        %s225 = smul.addr %s224, 256
        %s226 = scalar_lea.vmem [#allocation2], %s225
        %p227 = pneg %p43
        %p228 = pneg %p40
        %p229 = pneg %p64
        %p230 = pneg %p61
        %p231 = pneg %p85
        %p232 = pneg %p82
        %p233 = pneg %p106
        %p234 = pneg %p103
        %p235 = pneg %p127
        %p236 = pneg %p124
        %p237 = pneg %p153
        %p238 = pneg %p150
        %s239 = sand.u32 %s140, 1
        %s240 = scalar_lea.sflag [#allocation4], %s239
        %s241 = sand.u32 %s140, 1
        %s242 = smul.addr %s241, 256
        %s243 = scalar_lea.vmem [#allocation5], %s242
        %s244 = smul.u32 2, %s22
        %s245 = smul.u32 2, %s22
        %v246 = vld [vmem:[%s217] sm:$0xff]
        %v247 = vld [vmem:[%s217 + $0x8] sm:$0xff]
        %v248 = vld [vmem:[%s217 + $0x10] sm:$0xff]
        %v249 = vld [vmem:[%s217 + $0x18] sm:$0xff]
        %v250 = vld [vmem:[%s217 + $0x20] sm:$0xff]
        %v251 = vld [vmem:[%s217 + $0x28] sm:$0xff]
        %v252 = vld [vmem:[%s217 + $0x30] sm:$0xff]
        %v253 = vld [vmem:[%s217 + $0x38] sm:$0xff]
        %v254 = vld [vmem:[%s217 + $0x40] sm:$0xff]
        %v255 = vld [vmem:[%s217 + $0x48] sm:$0xff]
        %v256 = vld [vmem:[%s217 + $0x50] sm:$0xff]
        %v257 = vld [vmem:[%s217 + $0x58] sm:$0xff]
        %v258 = vld [vmem:[%s217 + $0x60] sm:$0xff]
        %v259 = vld [vmem:[%s217 + $0x68] sm:$0xff]
        %v260 = vld [vmem:[%s217 + $0x70] sm:$0xff]
        %v261 = vld [vmem:[%s217 + $0x78] sm:$0xff]
        %v262 = vadd.f32 %v246, %v247
        %263 = vadd.xlane.f32.xlu0 %v262
        %v264 = vpop.xlane.xlu0 %263
        %v265 = vadd.f32 %v248, %v249
        %266 = vadd.xlane.f32.xlu0 %v265
        %v267 = vpop.xlane.xlu0 %266
        %v268 = vadd.f32 %v250, %v251
        %269 = vadd.xlane.f32.xlu0 %v268
        %v270 = vpop.xlane.xlu0 %269
        %v271 = vadd.f32 %v252, %v253
        %272 = vadd.xlane.f32.xlu0 %v271
        %v273 = vpop.xlane.xlu0 %272
        %v274 = vadd.f32 %v254, %v255
        %275 = vadd.xlane.f32.xlu0 %v274
        %v276 = vpop.xlane.xlu0 %275
        %v277 = vadd.f32 %v256, %v257
        %278 = vadd.xlane.f32.xlu0 %v277
        %v279 = vpop.xlane.xlu0 %278
        %v280 = vadd.f32 %v258, %v259
        %281 = vadd.xlane.f32.xlu0 %v280
        %v282 = vpop.xlane.xlu0 %281
        %v283 = vadd.f32 %v260, %v261
        %284 = vadd.xlane.f32.xlu0 %v283
        %v285 = vpop.xlane.xlu0 %284
        %v286 = vmul.f32 %v264, 0.00390625
        %v287 = vmul.f32 %v267, 0.00390625
        %v288 = vmul.f32 %v270, 0.00390625
        %v289 = vmul.f32 %v273, 0.00390625
        %v290 = vmul.f32 %v276, 0.00390625
        %v291 = vmul.f32 %v279, 0.00390625
        %v292 = vmul.f32 %v282, 0.00390625
        %v293 = vmul.f32 %v285, 0.00390625
        %v294 = vld [vmem:[%s1] sm:$0xf]
        %v295 = vld [vmem:[%s2] sm:$0xf]
        %vm296 = vcmask 523264
        %v298 = vsel %vm296, %v294, 0
        %300 = vmatprep.subr.mxu0 0.0
        %301 = vmatpush1.msra.mxu0 0.0
        %302 = vmatprep.subr.mxu0 0.0
        %303 = vmatpush1.msra.mxu0 0.0
        %304 = vmatprep.subr.mxu0 0.0
        %305 = vmatpush1.msra.mxu0 0.0
        %306 = vmatprep.subr.mxu0 0.0
        %307 = vmatpush1.msra.mxu0 0.0
        %308 = vmatprep.subr.mxu0 0.0
        %309 = vmatpush1.msra.mxu0 0.0
        %310 = vmatprep.subr.mxu0 0.0
        %311 = vmatpush1.msra.mxu0 0.0
        %312 = vmatprep.subr.mxu0 0.0
        %313 = vmatpush1.msra.mxu0 0.0
        %314 = vmatprep.subr.mxu0 0.0
        %315 = vmatpush1.msra.mxu0 0.0
        %316 = vmatprep.subr.mxu0 0.0
        %317 = vmatpush1.msra.mxu0 %v293
        %318 = vmatprep.subr.mxu0 0.0
        %319 = vmatpush1.msra.mxu0 %v292
        %320 = vmatprep.subr.mxu0 0.0
        %321 = vmatpush1.msra.mxu0 %v291
        %322 = vmatprep.subr.mxu0 0.0
        %323 = vmatpush1.msra.mxu0 %v290
        %324 = vmatprep.subr.mxu0 0.0
        %325 = vmatpush1.msra.mxu0 %v289
        %326 = vmatprep.subr.mxu0 0.0
        %327 = vmatpush1.msra.mxu0 %v288
        %328 = vmatprep.subr.mxu0 0.0
        %329 = vmatpush1.msra.mxu0 %v287
        %330 = vmatprep.subr.mxu0 0.0
        %331 = vmatpush1.msra.mxu0 %v286
        %332 = vmatprep.subr.mxu0 0.0
        %333 = vmatpush2.msra.mxu0 0.0
        %334 = vmatprep.subr.mxu0 0.0
        %335 = vmatpush2.msra.mxu0 0.0
        %336 = vmatprep.subr.mxu0 0.0
        %337 = vmatpush2.msra.mxu0 0.0
        %338 = vmatprep.subr.mxu0 0.0
        %339 = vmatpush2.msra.mxu0 0.0
        %340 = vmatprep.subr.mxu0 0.0
        %341 = vmatpush2.msra.mxu0 0.0
        %342 = vmatprep.subr.mxu0 0.0
        %343 = vmatpush2.msra.mxu0 0.0
        %344 = vmatprep.subr.mxu0 0.0
        %345 = vmatpush2.msra.mxu0 0.0
        %346 = vmatprep.subr.mxu0 0.0
        %347 = vmatpush2.msra.mxu0 0.0
        %348 = vmatprep.subr.mxu0 0.0
        %349 = vmatpush2.msra.mxu0 0.0
        %350 = vmatprep.subr.mxu0 0.0
        %351 = vmatpush2.msra.mxu0 0.0
        %352 = vmatprep.subr.mxu0 0.0
        %353 = vmatpush2.msra.mxu0 0.0
        %354 = vmatprep.subr.mxu0 0.0
        %355 = vmatpush2.msra.mxu0 0.0
        %356 = vmatprep.subr.mxu0 0.0
        %357 = vmatpush2.msra.mxu0 0.0
        %358 = vmatprep.subr.mxu0 0.0
        %359 = vmatpush2.msra.mxu0 0.0
        %360 = vmatprep.subr.mxu0 0.0
        %361 = vmatpush2.msra.mxu0 0.0
        %362 = vmatprep.subr.mxu0 0.0
        %363 = vmatpush2.msra.mxu0 0.0
        %364 = vmatprep.mubr.f32.mxu0 0.0
        %365 = vmatmul.mubr.f32.gmra.mxu0 %v298
        %v366 = vpop.f32.mrf.mxu0
        %v367 = vadd.f32 %v295, %v366
        %v368 = vpop.f32.mrf.mxu0
        %369 = vdwg.mxu0
        %v370 = vmax.f32 %v367, 0.0
        %v371 = vld [vmem:[%s3] sm:$0xff]
        %v372 = vld [vmem:[%s3 + $0x8] sm:$0xff]
        %v373 = vld [vmem:[%s3 + $0x10] sm:$0xff]
        %v374 = vld [vmem:[%s3 + $0x18] sm:$0xff]
        %v375 = vld [vmem:[%s3 + $0x20] sm:$0xff]
        %v376 = vld [vmem:[%s3 + $0x28] sm:$0xff]
        %v377 = vld [vmem:[%s3 + $0x30] sm:$0xff]
        %v378 = vld [vmem:[%s3 + $0x38] sm:$0xff]
        %v379 = vld [vmem:[%s4] sm:$0xff]
        %v380 = vld [vmem:[%s4 + $0x8] sm:$0xff]
        %v381 = vld [vmem:[%s4 + $0x10] sm:$0xff]
        %v382 = vld [vmem:[%s4 + $0x18] sm:$0xff]
        %v383 = vld [vmem:[%s4 + $0x20] sm:$0xff]
        %v384 = vld [vmem:[%s4 + $0x28] sm:$0xff]
        %v385 = vld [vmem:[%s4 + $0x30] sm:$0xff]
        %v386 = vld [vmem:[%s4 + $0x38] sm:$0xff]
        %vm387 = vcmask 31744
        %v389 = vsel %vm387, %v371, 0
        %v392 = vsel %vm387, %v372, 0
        %v395 = vsel %vm387, %v373, 0
        %v398 = vsel %vm387, %v374, 0
        %v401 = vsel %vm387, %v375, 0
        %v404 = vsel %vm387, %v376, 0
        %v407 = vsel %vm387, %v377, 0
        %v410 = vsel %vm387, %v378, 0
        %vm412 = vcmask 1043456
        %v414 = vsel %vm412, %v370, 0
        %416 = vmatprep.subr.mxu0 0.0
        %417 = vmatpush1.msra.mxu0 0.0
        %418 = vmatprep.subr.mxu0 0.0
        %419 = vmatpush1.msra.mxu0 0.0
        %420 = vmatprep.subr.mxu0 0.0
        %421 = vmatpush1.msra.mxu0 0.0
        %422 = vmatprep.subr.mxu0 0.0
        %423 = vmatpush1.msra.mxu0 0.0
        %424 = vmatprep.subr.mxu0 0.0
        %425 = vmatpush1.msra.mxu0 0.0
        %426 = vmatprep.subr.mxu0 0.0
        %427 = vmatpush1.msra.mxu0 0.0
        %428 = vmatprep.subr.mxu0 0.0
        %429 = vmatpush1.msra.mxu0 0.0
        %430 = vmatprep.subr.mxu0 0.0
        %431 = vmatpush1.msra.mxu0 0.0
        %432 = vmatprep.subr.mxu0 0.0
        %433 = vmatpush1.msra.mxu0 0.0
        %434 = vmatprep.subr.mxu0 0.0
        %435 = vmatpush1.msra.mxu0 0.0
        %436 = vmatprep.subr.mxu0 0.0
        %437 = vmatpush1.msra.mxu0 0.0
        %438 = vmatprep.subr.mxu0 0.0
        %439 = vmatpush1.msra.mxu0 0.0
        %440 = vmatprep.subr.mxu0 0.0
        %441 = vmatpush1.msra.mxu0 0.0
        %442 = vmatprep.subr.mxu0 0.0
        %443 = vmatpush1.msra.mxu0 0.0
        %444 = vmatprep.subr.mxu0 0.0
        %445 = vmatpush1.msra.mxu0 0.0
        %446 = vmatprep.subr.mxu0 0.0
        %447 = vmatpush1.msra.mxu0 %v414
        %448 = vmatprep.subr.mxu0 0.0
        %449 = vmatpush2.msra.mxu0 0.0
        %450 = vmatprep.subr.mxu0 0.0
        %451 = vmatpush2.msra.mxu0 0.0
        %452 = vmatprep.subr.mxu0 0.0
        %453 = vmatpush2.msra.mxu0 0.0
        %454 = vmatprep.subr.mxu0 0.0
        %455 = vmatpush2.msra.mxu0 0.0
        %456 = vmatprep.subr.mxu0 0.0
        %457 = vmatpush2.msra.mxu0 0.0
        %458 = vmatprep.subr.mxu0 0.0
        %459 = vmatpush2.msra.mxu0 0.0
        %460 = vmatprep.subr.mxu0 0.0
        %461 = vmatpush2.msra.mxu0 0.0
        %462 = vmatprep.subr.mxu0 0.0
        %463 = vmatpush2.msra.mxu0 0.0
        %464 = vmatprep.subr.mxu0 0.0
        %465 = vmatpush2.msra.mxu0 0.0
        %466 = vmatprep.subr.mxu0 0.0
        %467 = vmatpush2.msra.mxu0 0.0
        %468 = vmatprep.subr.mxu0 0.0
        %469 = vmatpush2.msra.mxu0 0.0
        %470 = vmatprep.subr.mxu0 0.0
        %471 = vmatpush2.msra.mxu0 0.0
        %472 = vmatprep.subr.mxu0 0.0
        %473 = vmatpush2.msra.mxu0 0.0
        %474 = vmatprep.subr.mxu0 0.0
        %475 = vmatpush2.msra.mxu0 0.0
        %476 = vmatprep.subr.mxu0 0.0
        %477 = vmatpush2.msra.mxu0 0.0
        %478 = vmatprep.subr.mxu0 0.0
        %479 = vmatpush2.msra.mxu0 0.0
        %480 = vmatprep.mubr.f32.mxu0 0.0
        %481 = vmatmul.mubr.f32.gmra.mxu0 %v389
        %v482 = vpop.f32.mrf.mxu0
        %v483 = vadd.f32 %v379, %v482
        %v484 = vpop.f32.mrf.mxu0
        %485 = vmatprep.mubr.f32.mxu0 0.0
        %486 = vmatmul.mubr.f32.gmra.mxu0 %v392
        %v487 = vpop.f32.mrf.mxu0
        %v488 = vadd.f32 %v380, %v487
        %v489 = vpop.f32.mrf.mxu0
        %490 = vmatprep.mubr.f32.mxu0 0.0
        %491 = vmatmul.mubr.f32.gmra.mxu0 %v395
        %v492 = vpop.f32.mrf.mxu0
        %v493 = vadd.f32 %v381, %v492
        %v494 = vpop.f32.mrf.mxu0
        %495 = vmatprep.mubr.f32.mxu0 0.0
        %496 = vmatmul.mubr.f32.gmra.mxu0 %v398
        %v497 = vpop.f32.mrf.mxu0
        %v498 = vadd.f32 %v382, %v497
        %v499 = vpop.f32.mrf.mxu0
        %500 = vmatprep.mubr.f32.mxu0 0.0
        %501 = vmatmul.mubr.f32.gmra.mxu0 %v401
        %v502 = vpop.f32.mrf.mxu0
        %v503 = vadd.f32 %v383, %v502
        %v504 = vpop.f32.mrf.mxu0
        %505 = vmatprep.mubr.f32.mxu0 0.0
        %506 = vmatmul.mubr.f32.gmra.mxu0 %v404
        %v507 = vpop.f32.mrf.mxu0
        %v508 = vadd.f32 %v384, %v507
        %v509 = vpop.f32.mrf.mxu0
        %510 = vmatprep.mubr.f32.mxu0 0.0
        %511 = vmatmul.mubr.f32.gmra.mxu0 %v407
        %v512 = vpop.f32.mrf.mxu0
        %v513 = vadd.f32 %v385, %v512
        %v514 = vpop.f32.mrf.mxu0
        %515 = vmatprep.mubr.f32.mxu0 0.0
        %516 = vmatmul.mubr.f32.gmra.mxu0 %v410
        %v517 = vpop.f32.mrf.mxu0
        %v518 = vadd.f32 %v386, %v517
        %v519 = vpop.f32.mrf.mxu0
        %520 = vdwg.mxu0
        %v521 = vsub.f32 0.0, %v483
        %v522 = vsub.f32 0.0, %v488
        %v523 = vsub.f32 0.0, %v493
        %v524 = vsub.f32 0.0, %v498
        %v525 = vsub.f32 0.0, %v503
        %v526 = vsub.f32 0.0, %v508
        %v527 = vsub.f32 0.0, %v513
        %v528 = vsub.f32 0.0, %v518
        %v529 = vmul.f32 %v521, 1.442695
        %v530 = vpow.pop %v529
        %v531 = vmul.f32 %v522, 1.442695
        %v532 = vpow.pop %v531
        %v533 = vmul.f32 %v523, 1.442695
        %v534 = vpow.pop %v533
        %v535 = vmul.f32 %v524, 1.442695
        %v536 = vpow.pop %v535
        %v537 = vmul.f32 %v525, 1.442695
        %v538 = vpow.pop %v537
        %v539 = vmul.f32 %v526, 1.442695
        %v540 = vpow.pop %v539
        %v541 = vmul.f32 %v527, 1.442695
        %v542 = vpow.pop %v541
        %v543 = vmul.f32 %v528, 1.442695
        %v544 = vpow.pop %v543
        %v545 = vadd.f32 %v530, 1.0
        %v546 = vadd.f32 %v532, 1.0
        %v547 = vadd.f32 %v534, 1.0
        %v548 = vadd.f32 %v536, 1.0
        %v549 = vadd.f32 %v538, 1.0
        %v550 = vadd.f32 %v540, 1.0
        %v551 = vadd.f32 %v542, 1.0
        %v552 = vadd.f32 %v544, 1.0
        %v553 = vrcp.pop %v545
        %v554 = vmul.f32 1.0, %v553
        %v555 = vrcp.pop %v546
        %v556 = vmul.f32 1.0, %v555
        %v557 = vrcp.pop %v547
        %v558 = vmul.f32 1.0, %v557
        %v559 = vrcp.pop %v548
        %v560 = vmul.f32 1.0, %v559
        %v561 = vrcp.pop %v549
        %v562 = vmul.f32 1.0, %v561
        %v563 = vrcp.pop %v550
        %v564 = vmul.f32 1.0, %v563
        %v565 = vrcp.pop %v551
        %v566 = vmul.f32 1.0, %v565
        %v567 = vrcp.pop %v552
        %v568 = vmul.f32 1.0, %v567
        %570 = vset.pattern.permute.xlu0 0
        %571 = vperm.xlu0 %570, %v554
        %v572 = vpop.permute.xlu0 %571
        %575 = vset.pattern.permute.xlu0 0
        %576 = vperm.xlu0 %575, %v556
        %v577 = vpop.permute.xlu0 %576
        %580 = vset.pattern.permute.xlu0 0
        %581 = vperm.xlu0 %580, %v558
        %v582 = vpop.permute.xlu0 %581
        %585 = vset.pattern.permute.xlu0 0
        %586 = vperm.xlu0 %585, %v560
        %v587 = vpop.permute.xlu0 %586
        %590 = vset.pattern.permute.xlu0 0
        %591 = vperm.xlu0 %590, %v562
        %v592 = vpop.permute.xlu0 %591
        %595 = vset.pattern.permute.xlu0 0
        %596 = vperm.xlu0 %595, %v564
        %v597 = vpop.permute.xlu0 %596
        %600 = vset.pattern.permute.xlu0 0
        %601 = vperm.xlu0 %600, %v566
        %v602 = vpop.permute.xlu0 %601
        %605 = vset.pattern.permute.xlu0 0
        %606 = vperm.xlu0 %605, %v568
        %v607 = vpop.permute.xlu0 %606
        %v609 = vmul.f32 %v246, %v572
        %v610 = vmul.f32 %v247, %v572
        %v611 = vmul.f32 %v248, %v577
        %v612 = vmul.f32 %v249, %v577
        %v613 = vmul.f32 %v250, %v582
        %v614 = vmul.f32 %v251, %v582
        %v615 = vmul.f32 %v252, %v587
        %v616 = vmul.f32 %v253, %v587
        %v617 = vmul.f32 %v254, %v592
        %v618 = vmul.f32 %v255, %v592
        %v619 = vmul.f32 %v256, %v597
        %v620 = vmul.f32 %v257, %v597
        %v621 = vmul.f32 %v258, %v602
        %v622 = vmul.f32 %v259, %v602
        %v623 = vmul.f32 %v260, %v607
        %v624 = vmul.f32 %v261, %v607
        %625 = vst [vmem:[%s243] sm:$0xff] %v609
        %626 = vst [vmem:[%s243 + $0x8] sm:$0xff] %v610
        %627 = vst [vmem:[%s243 + $0x10] sm:$0xff] %v611
        %628 = vst [vmem:[%s243 + $0x18] sm:$0xff] %v612
        %629 = vst [vmem:[%s243 + $0x20] sm:$0xff] %v613
        %630 = vst [vmem:[%s243 + $0x28] sm:$0xff] %v614
        %631 = vst [vmem:[%s243 + $0x30] sm:$0xff] %v615
        %632 = vst [vmem:[%s243 + $0x38] sm:$0xff] %v616
        %633 = vst [vmem:[%s243 + $0x40] sm:$0xff] %v617
        %634 = vst [vmem:[%s243 + $0x48] sm:$0xff] %v618
        %635 = vst [vmem:[%s243 + $0x50] sm:$0xff] %v619
        %636 = vst [vmem:[%s243 + $0x58] sm:$0xff] %v620
        %637 = vst [vmem:[%s243 + $0x60] sm:$0xff] %v621
        %638 = vst [vmem:[%s243 + $0x68] sm:$0xff] %v622
        %639 = vst [vmem:[%s243 + $0x70] sm:$0xff] %v623
        %640 = vst [vmem:[%s243 + $0x78] sm:$0xff] %v624
        %s641 = scalar_lea.vmem %s217, 128 [#allocation2]
        %v642 = vld [vmem:[%s641] sm:$0xff]
        %v643 = vld [vmem:[%s641 + $0x8] sm:$0xff]
        %v644 = vld [vmem:[%s641 + $0x10] sm:$0xff]
        %v645 = vld [vmem:[%s641 + $0x18] sm:$0xff]
        %v646 = vld [vmem:[%s641 + $0x20] sm:$0xff]
        %v647 = vld [vmem:[%s641 + $0x28] sm:$0xff]
        %v648 = vld [vmem:[%s641 + $0x30] sm:$0xff]
        %v649 = vld [vmem:[%s641 + $0x38] sm:$0xff]
        %v650 = vld [vmem:[%s641 + $0x40] sm:$0xff]
        %v651 = vld [vmem:[%s641 + $0x48] sm:$0xff]
        %v652 = vld [vmem:[%s641 + $0x50] sm:$0xff]
        %v653 = vld [vmem:[%s641 + $0x58] sm:$0xff]
        %v654 = vld [vmem:[%s641 + $0x60] sm:$0xff]
        %v655 = vld [vmem:[%s641 + $0x68] sm:$0xff]
        %v656 = vld [vmem:[%s641 + $0x70] sm:$0xff]
        %v657 = vld [vmem:[%s641 + $0x78] sm:$0xff]
        %v658 = vadd.f32 %v642, %v643
        %659 = vadd.xlane.f32.xlu0 %v658
        %v660 = vpop.xlane.xlu0 %659
        %v661 = vadd.f32 %v644, %v645
        %662 = vadd.xlane.f32.xlu0 %v661
        %v663 = vpop.xlane.xlu0 %662
        %v664 = vadd.f32 %v646, %v647
        %665 = vadd.xlane.f32.xlu0 %v664
        %v666 = vpop.xlane.xlu0 %665
        %v667 = vadd.f32 %v648, %v649
        %668 = vadd.xlane.f32.xlu0 %v667
        %v669 = vpop.xlane.xlu0 %668
        %v670 = vadd.f32 %v650, %v651
        %671 = vadd.xlane.f32.xlu0 %v670
        %v672 = vpop.xlane.xlu0 %671
        %v673 = vadd.f32 %v652, %v653
        %674 = vadd.xlane.f32.xlu0 %v673
        %v675 = vpop.xlane.xlu0 %674
        %v676 = vadd.f32 %v654, %v655
        %677 = vadd.xlane.f32.xlu0 %v676
        %v678 = vpop.xlane.xlu0 %677
        %v679 = vadd.f32 %v656, %v657
        %680 = vadd.xlane.f32.xlu0 %v679
        %v681 = vpop.xlane.xlu0 %680
        %v682 = vmul.f32 %v660, 0.00390625
        %v683 = vmul.f32 %v663, 0.00390625
        %v684 = vmul.f32 %v666, 0.00390625
        %v685 = vmul.f32 %v669, 0.00390625
        %v686 = vmul.f32 %v672, 0.00390625
        %v687 = vmul.f32 %v675, 0.00390625
        %v688 = vmul.f32 %v678, 0.00390625
        %v689 = vmul.f32 %v681, 0.00390625
        %v690 = vld [vmem:[%s1] sm:$0xf]
        %v691 = vld [vmem:[%s2] sm:$0xf]
        %v693 = vsel %vm296, %v690, 0
        %695 = vmatprep.subr.mxu0 0.0
        %696 = vmatpush1.msra.mxu0 0.0
        %697 = vmatprep.subr.mxu0 0.0
        %698 = vmatpush1.msra.mxu0 0.0
        %699 = vmatprep.subr.mxu0 0.0
        %700 = vmatpush1.msra.mxu0 0.0
        %701 = vmatprep.subr.mxu0 0.0
        %702 = vmatpush1.msra.mxu0 0.0
        %703 = vmatprep.subr.mxu0 0.0
        %704 = vmatpush1.msra.mxu0 0.0
        %705 = vmatprep.subr.mxu0 0.0
        %706 = vmatpush1.msra.mxu0 0.0
        %707 = vmatprep.subr.mxu0 0.0
        %708 = vmatpush1.msra.mxu0 0.0
        %709 = vmatprep.subr.mxu0 0.0
        %710 = vmatpush1.msra.mxu0 0.0
        %711 = vmatprep.subr.mxu0 0.0
        %712 = vmatpush1.msra.mxu0 %v689
        %713 = vmatprep.subr.mxu0 0.0
        %714 = vmatpush1.msra.mxu0 %v688
        %715 = vmatprep.subr.mxu0 0.0
        %716 = vmatpush1.msra.mxu0 %v687
        %717 = vmatprep.subr.mxu0 0.0
        %718 = vmatpush1.msra.mxu0 %v686
        %719 = vmatprep.subr.mxu0 0.0
        %720 = vmatpush1.msra.mxu0 %v685
        %721 = vmatprep.subr.mxu0 0.0
        %722 = vmatpush1.msra.mxu0 %v684
        %723 = vmatprep.subr.mxu0 0.0
        %724 = vmatpush1.msra.mxu0 %v683
        %725 = vmatprep.subr.mxu0 0.0
        %726 = vmatpush1.msra.mxu0 %v682
        %727 = vmatprep.subr.mxu0 0.0
        %728 = vmatpush2.msra.mxu0 0.0
        %729 = vmatprep.subr.mxu0 0.0
        %730 = vmatpush2.msra.mxu0 0.0
        %731 = vmatprep.subr.mxu0 0.0
        %732 = vmatpush2.msra.mxu0 0.0
        %733 = vmatprep.subr.mxu0 0.0
        %734 = vmatpush2.msra.mxu0 0.0
        %735 = vmatprep.subr.mxu0 0.0
        %736 = vmatpush2.msra.mxu0 0.0
        %737 = vmatprep.subr.mxu0 0.0
        %738 = vmatpush2.msra.mxu0 0.0
        %739 = vmatprep.subr.mxu0 0.0
        %740 = vmatpush2.msra.mxu0 0.0
        %741 = vmatprep.subr.mxu0 0.0
        %742 = vmatpush2.msra.mxu0 0.0
        %743 = vmatprep.subr.mxu0 0.0
        %744 = vmatpush2.msra.mxu0 0.0
        %745 = vmatprep.subr.mxu0 0.0
        %746 = vmatpush2.msra.mxu0 0.0
        %747 = vmatprep.subr.mxu0 0.0
        %748 = vmatpush2.msra.mxu0 0.0
        %749 = vmatprep.subr.mxu0 0.0
        %750 = vmatpush2.msra.mxu0 0.0
        %751 = vmatprep.subr.mxu0 0.0
        %752 = vmatpush2.msra.mxu0 0.0
        %753 = vmatprep.subr.mxu0 0.0
        %754 = vmatpush2.msra.mxu0 0.0
        %755 = vmatprep.subr.mxu0 0.0
        %756 = vmatpush2.msra.mxu0 0.0
        %757 = vmatprep.subr.mxu0 0.0
        %758 = vmatpush2.msra.mxu0 0.0
        %759 = vmatprep.mubr.f32.mxu0 0.0
        %760 = vmatmul.mubr.f32.gmra.mxu0 %v693
        %v761 = vpop.f32.mrf.mxu0
        %v762 = vadd.f32 %v691, %v761
        %v763 = vpop.f32.mrf.mxu0
        %764 = vdwg.mxu0
        %v765 = vmax.f32 %v762, 0.0
        %v766 = vld [vmem:[%s3] sm:$0xff]
        %v767 = vld [vmem:[%s3 + $0x8] sm:$0xff]
        %v768 = vld [vmem:[%s3 + $0x10] sm:$0xff]
        %v769 = vld [vmem:[%s3 + $0x18] sm:$0xff]
        %v770 = vld [vmem:[%s3 + $0x20] sm:$0xff]
        %v771 = vld [vmem:[%s3 + $0x28] sm:$0xff]
        %v772 = vld [vmem:[%s3 + $0x30] sm:$0xff]
        %v773 = vld [vmem:[%s3 + $0x38] sm:$0xff]
        %v774 = vld [vmem:[%s4] sm:$0xff]
        %v775 = vld [vmem:[%s4 + $0x8] sm:$0xff]
        %v776 = vld [vmem:[%s4 + $0x10] sm:$0xff]
        %v777 = vld [vmem:[%s4 + $0x18] sm:$0xff]
        %v778 = vld [vmem:[%s4 + $0x20] sm:$0xff]
        %v779 = vld [vmem:[%s4 + $0x28] sm:$0xff]
        %v780 = vld [vmem:[%s4 + $0x30] sm:$0xff]
        %v781 = vld [vmem:[%s4 + $0x38] sm:$0xff]
        %v783 = vsel %vm387, %v766, 0
        %v786 = vsel %vm387, %v767, 0
        %v789 = vsel %vm387, %v768, 0
        %v792 = vsel %vm387, %v769, 0
        %v795 = vsel %vm387, %v770, 0
        %v798 = vsel %vm387, %v771, 0
        %v801 = vsel %vm387, %v772, 0
        %v804 = vsel %vm387, %v773, 0
        %v807 = vsel %vm412, %v765, 0
        %809 = vmatprep.subr.mxu0 0.0
        %810 = vmatpush1.msra.mxu0 0.0
        %811 = vmatprep.subr.mxu0 0.0
        %812 = vmatpush1.msra.mxu0 0.0
        %813 = vmatprep.subr.mxu0 0.0
        %814 = vmatpush1.msra.mxu0 0.0
        %815 = vmatprep.subr.mxu0 0.0
        %816 = vmatpush1.msra.mxu0 0.0
        %817 = vmatprep.subr.mxu0 0.0
        %818 = vmatpush1.msra.mxu0 0.0
        %819 = vmatprep.subr.mxu0 0.0
        %820 = vmatpush1.msra.mxu0 0.0
        %821 = vmatprep.subr.mxu0 0.0
        %822 = vmatpush1.msra.mxu0 0.0
        %823 = vmatprep.subr.mxu0 0.0
        %824 = vmatpush1.msra.mxu0 0.0
        %825 = vmatprep.subr.mxu0 0.0
        %826 = vmatpush1.msra.mxu0 0.0
        %827 = vmatprep.subr.mxu0 0.0
        %828 = vmatpush1.msra.mxu0 0.0
        %829 = vmatprep.subr.mxu0 0.0
        %830 = vmatpush1.msra.mxu0 0.0
        %831 = vmatprep.subr.mxu0 0.0
        %832 = vmatpush1.msra.mxu0 0.0
        %833 = vmatprep.subr.mxu0 0.0
        %834 = vmatpush1.msra.mxu0 0.0
        %835 = vmatprep.subr.mxu0 0.0
        %836 = vmatpush1.msra.mxu0 0.0
        %837 = vmatprep.subr.mxu0 0.0
        %838 = vmatpush1.msra.mxu0 0.0
        %839 = vmatprep.subr.mxu0 0.0
        %840 = vmatpush1.msra.mxu0 %v807
        %841 = vmatprep.subr.mxu0 0.0
        %842 = vmatpush2.msra.mxu0 0.0
        %843 = vmatprep.subr.mxu0 0.0
        %844 = vmatpush2.msra.mxu0 0.0
        %845 = vmatprep.subr.mxu0 0.0
        %846 = vmatpush2.msra.mxu0 0.0
        %847 = vmatprep.subr.mxu0 0.0
        %848 = vmatpush2.msra.mxu0 0.0
        %849 = vmatprep.subr.mxu0 0.0
        %850 = vmatpush2.msra.mxu0 0.0
        %851 = vmatprep.subr.mxu0 0.0
        %852 = vmatpush2.msra.mxu0 0.0
        %853 = vmatprep.subr.mxu0 0.0
        %854 = vmatpush2.msra.mxu0 0.0
        %855 = vmatprep.subr.mxu0 0.0
        %856 = vmatpush2.msra.mxu0 0.0
        %857 = vmatprep.subr.mxu0 0.0
        %858 = vmatpush2.msra.mxu0 0.0
        %859 = vmatprep.subr.mxu0 0.0
        %860 = vmatpush2.msra.mxu0 0.0
        %861 = vmatprep.subr.mxu0 0.0
        %862 = vmatpush2.msra.mxu0 0.0
        %863 = vmatprep.subr.mxu0 0.0
        %864 = vmatpush2.msra.mxu0 0.0
        %865 = vmatprep.subr.mxu0 0.0
        %866 = vmatpush2.msra.mxu0 0.0
        %867 = vmatprep.subr.mxu0 0.0
        %868 = vmatpush2.msra.mxu0 0.0
        %869 = vmatprep.subr.mxu0 0.0
        %870 = vmatpush2.msra.mxu0 0.0
        %871 = vmatprep.subr.mxu0 0.0
        %872 = vmatpush2.msra.mxu0 0.0
        %873 = vmatprep.mubr.f32.mxu0 0.0
        %874 = vmatmul.mubr.f32.gmra.mxu0 %v783
        %v875 = vpop.f32.mrf.mxu0
        %v876 = vadd.f32 %v774, %v875
        %v877 = vpop.f32.mrf.mxu0
        %878 = vmatprep.mubr.f32.mxu0 0.0
        %879 = vmatmul.mubr.f32.gmra.mxu0 %v786
        %v880 = vpop.f32.mrf.mxu0
        %v881 = vadd.f32 %v775, %v880
        %v882 = vpop.f32.mrf.mxu0
        %883 = vmatprep.mubr.f32.mxu0 0.0
        %884 = vmatmul.mubr.f32.gmra.mxu0 %v789
        %v885 = vpop.f32.mrf.mxu0
        %v886 = vadd.f32 %v776, %v885
        %v887 = vpop.f32.mrf.mxu0
        %888 = vmatprep.mubr.f32.mxu0 0.0
        %889 = vmatmul.mubr.f32.gmra.mxu0 %v792
        %v890 = vpop.f32.mrf.mxu0
        %v891 = vadd.f32 %v777, %v890
        %v892 = vpop.f32.mrf.mxu0
        %893 = vmatprep.mubr.f32.mxu0 0.0
        %894 = vmatmul.mubr.f32.gmra.mxu0 %v795
        %v895 = vpop.f32.mrf.mxu0
        %v896 = vadd.f32 %v778, %v895
        %v897 = vpop.f32.mrf.mxu0
        %898 = vmatprep.mubr.f32.mxu0 0.0
        %899 = vmatmul.mubr.f32.gmra.mxu0 %v798
        %v900 = vpop.f32.mrf.mxu0
        %v901 = vadd.f32 %v779, %v900
        %v902 = vpop.f32.mrf.mxu0
        %903 = vmatprep.mubr.f32.mxu0 0.0
        %904 = vmatmul.mubr.f32.gmra.mxu0 %v801
        %v905 = vpop.f32.mrf.mxu0
        %v906 = vadd.f32 %v780, %v905
        %v907 = vpop.f32.mrf.mxu0
        %908 = vmatprep.mubr.f32.mxu0 0.0
        %909 = vmatmul.mubr.f32.gmra.mxu0 %v804
        %v910 = vpop.f32.mrf.mxu0
        %v911 = vadd.f32 %v781, %v910
        %v912 = vpop.f32.mrf.mxu0
        %913 = vdwg.mxu0
        %v914 = vsub.f32 0.0, %v876
        %v915 = vsub.f32 0.0, %v881
        %v916 = vsub.f32 0.0, %v886
        %v917 = vsub.f32 0.0, %v891
        %v918 = vsub.f32 0.0, %v896
        %v919 = vsub.f32 0.0, %v901
        %v920 = vsub.f32 0.0, %v906
        %v921 = vsub.f32 0.0, %v911
        %v922 = vmul.f32 %v914, 1.442695
        %v923 = vpow.pop %v922
        %v924 = vmul.f32 %v915, 1.442695
        %v925 = vpow.pop %v924
        %v926 = vmul.f32 %v916, 1.442695
        %v927 = vpow.pop %v926
        %v928 = vmul.f32 %v917, 1.442695
        %v929 = vpow.pop %v928
        %v930 = vmul.f32 %v918, 1.442695
        %v931 = vpow.pop %v930
        %v932 = vmul.f32 %v919, 1.442695
        %v933 = vpow.pop %v932
        %v934 = vmul.f32 %v920, 1.442695
        %v935 = vpow.pop %v934
        %v936 = vmul.f32 %v921, 1.442695
        %v937 = vpow.pop %v936
        %v938 = vadd.f32 %v923, 1.0
        %v939 = vadd.f32 %v925, 1.0
        %v940 = vadd.f32 %v927, 1.0
        %v941 = vadd.f32 %v929, 1.0
        %v942 = vadd.f32 %v931, 1.0
        %v943 = vadd.f32 %v933, 1.0
        %v944 = vadd.f32 %v935, 1.0
        %v945 = vadd.f32 %v937, 1.0
        %v946 = vrcp.pop %v938
        %v947 = vmul.f32 1.0, %v946
        %v948 = vrcp.pop %v939
        %v949 = vmul.f32 1.0, %v948
        %v950 = vrcp.pop %v940
        %v951 = vmul.f32 1.0, %v950
        %v952 = vrcp.pop %v941
        %v953 = vmul.f32 1.0, %v952
        %v954 = vrcp.pop %v942
        %v955 = vmul.f32 1.0, %v954
        %v956 = vrcp.pop %v943
        %v957 = vmul.f32 1.0, %v956
        %v958 = vrcp.pop %v944
        %v959 = vmul.f32 1.0, %v958
        %v960 = vrcp.pop %v945
        %v961 = vmul.f32 1.0, %v960
        %963 = vset.pattern.permute.xlu0 0
        %964 = vperm.xlu0 %963, %v947
        %v965 = vpop.permute.xlu0 %964
        %968 = vset.pattern.permute.xlu0 0
        %969 = vperm.xlu0 %968, %v949
        %v970 = vpop.permute.xlu0 %969
        %973 = vset.pattern.permute.xlu0 0
        %974 = vperm.xlu0 %973, %v951
        %v975 = vpop.permute.xlu0 %974
        %978 = vset.pattern.permute.xlu0 0
        %979 = vperm.xlu0 %978, %v953
        %v980 = vpop.permute.xlu0 %979
        %983 = vset.pattern.permute.xlu0 0
        %984 = vperm.xlu0 %983, %v955
        %v985 = vpop.permute.xlu0 %984
        %988 = vset.pattern.permute.xlu0 0
        %989 = vperm.xlu0 %988, %v957
        %v990 = vpop.permute.xlu0 %989
        %993 = vset.pattern.permute.xlu0 0
        %994 = vperm.xlu0 %993, %v959
        %v995 = vpop.permute.xlu0 %994
        %998 = vset.pattern.permute.xlu0 0
        %999 = vperm.xlu0 %998, %v961
        %v1000 = vpop.permute.xlu0 %999
        %v1002 = vmul.f32 %v642, %v965
        %v1003 = vmul.f32 %v643, %v965
        %v1004 = vmul.f32 %v644, %v970
        %v1005 = vmul.f32 %v645, %v970
        %v1006 = vmul.f32 %v646, %v975
        %v1007 = vmul.f32 %v647, %v975
        %v1008 = vmul.f32 %v648, %v980
        %v1009 = vmul.f32 %v649, %v980
        %v1010 = vmul.f32 %v650, %v985
        %v1011 = vmul.f32 %v651, %v985
        %v1012 = vmul.f32 %v652, %v990
        %v1013 = vmul.f32 %v653, %v990
        %v1014 = vmul.f32 %v654, %v995
        %v1015 = vmul.f32 %v655, %v995
        %v1016 = vmul.f32 %v656, %v1000
        %v1017 = vmul.f32 %v657, %v1000
        %s1018 = scalar_lea.vmem %s243, 128 [#allocation5]
        %1019 = vst [vmem:[%s1018] sm:$0xff] %v1002
        %1020 = vst [vmem:[%s1018 + $0x8] sm:$0xff] %v1003
        %1021 = vst [vmem:[%s1018 + $0x10] sm:$0xff] %v1004
        %1022 = vst [vmem:[%s1018 + $0x18] sm:$0xff] %v1005
        %1023 = vst [vmem:[%s1018 + $0x20] sm:$0xff] %v1006
        %1024 = vst [vmem:[%s1018 + $0x28] sm:$0xff] %v1007
        %1025 = vst [vmem:[%s1018 + $0x30] sm:$0xff] %v1008
        %1026 = vst [vmem:[%s1018 + $0x38] sm:$0xff] %v1009
        %1027 = vst [vmem:[%s1018 + $0x40] sm:$0xff] %v1010
        %1028 = vst [vmem:[%s1018 + $0x48] sm:$0xff] %v1011
        %1029 = vst [vmem:[%s1018 + $0x50] sm:$0xff] %v1012
        %1030 = vst [vmem:[%s1018 + $0x58] sm:$0xff] %v1013
        %1031 = vst [vmem:[%s1018 + $0x60] sm:$0xff] %v1014
        %1032 = vst [vmem:[%s1018 + $0x68] sm:$0xff] %v1015
        %1033 = vst [vmem:[%s1018 + $0x70] sm:$0xff] %v1016
        %1034 = vst [vmem:[%s1018 + $0x78] sm:$0xff] %v1017
        %s1035 = sand.u32 %s140, 1
        %s1036 = scalar_lea.sflag [#allocation4], %s1035
        %s1037 = sand.u32 %s140, 1
        %s1038 = smul.addr %s1037, 256
        %s1039 = scalar_lea.vmem [#allocation5], %s1038
        // Predicated region
        $region45: #{tpu_custom_call.1} parent=39 // pred_check
          %p1040 = pneg %p150
        $region46: #{tpu_custom_call.1} parent=39 // pred_check_branch
          %1042 = sbr.rel (%p1040) target = $region48
        $region47: #{tpu_custom_call.1} parent=39 // pred_region
          %s1043 = smul.u32 2, %s22
          %s1045 = ssub.s32 4096, 4096
          %1046 = vsyncadd %s1036, %s1045
          %s1047 = smul.addr %s1043, 16
          %s1048 = smul.addr %s1047, 128
          %s1049 = scalar_lea.hbm %s5, %s1048
          %s1050 = sshll.u32 %s1039, 4
          %s1051 = int_to_ptr.vmem [resolvable:$true] %s1050
          %1056 = dma.vmem_to_hbm [thread:$0]  %s1051, 4096, %s1049, %s1036, 256, 256, 16
        $region48: #{tpu_custom_call.1} parent=39 // pred_fallthru
          _
      $region40: #{tpu_custom_call.1} parent=5 // pred_fallthru
        _
      %p1057 = scmp.le.s32.totalorder 2, %s17
      // Predicated region
      $region49: #{tpu_custom_call.1} parent=5 // pred_check
        %p1058 = pneg %p1057
      $region50: #{tpu_custom_call.1} parent=5 // pred_check_branch
        %1060 = sbr.rel (%p1058) target = $region52
      $region51: #{tpu_custom_call.1} parent=5 // pred_region
        %s1061 = ssub.s32 %s17, 2
        // Predicated region
        $region53: #{tpu_custom_call.1} parent=51 // pred_check
          %p1062 = pneg %p156
        $region54: #{tpu_custom_call.1} parent=51 // pred_check_branch
          %1064 = sbr.rel (%p1062) target = $region56
        $region55: #{tpu_custom_call.1} parent=51 // pred_region
          %s1065 = sand.u32 %s141, 1
          %s1066 = scalar_lea.sflag [#allocation4], %s1065
          %s1067 = sand.u32 %s141, 1
          %s1068 = smul.addr %s1067, 256
          %s1069 = scalar_lea.vmem [#allocation5], %s1068
          %1070 = dma.done %s1066, 4096
        $region56: #{tpu_custom_call.1} parent=51 // pred_fallthru
          _
      $region52: #{tpu_custom_call.1} parent=5 // pred_fallthru
        _
    $region6: #{tpu_custom_call.1} parent=1 // loop_footer
      %s21 = sadd.s32 1, %s17
    $region7: #{tpu_custom_call.1} parent=1 // loop_footer_branch
      %16 = sbr.rel target = $region3
    $region8: #{tpu_custom_call.1} parent=1 // loop_exit
      _
    %1071 = vsyncpa [#allocation3], 1
    %s1072 = scalar_lea.sflag [#allocation3], 1
    %1073 = vsyncpa %s1072, 1
    %1074 = vsyncpa [#allocation4], 1
    %s1075 = scalar_lea.sflag [#allocation4], 1
    %1076 = vsyncpa %s1075, 1

</llo_original>
